<compile_context>
chip_gen: v7x
topology: tpu7x:2x2x1
jax: 0.10.0
libtpu: 0.0.40
codegen_flags: <defaults>
</compile_context>

<pallas_src>
import functools

import numpy as np
import jax
import jax.numpy as jnp
from jax import lax
from jax.experimental import pallas as pl
from jax.experimental.pallas import tpu as pltpu


def _angular_kernel(a_ref, p_ref, mask_ref, batch_ref, out_ref,
                    ang_acc, npair_acc, *, tan2, lam, l2_weight, n_pairs):
    """One grid step processes a tile of `tile_n` (anchor, positive) pairs.

    a_ref/p_ref : (tile_n, D)  raw anchor / positive embeddings
    mask_ref    : (tile_n, BS) 1.0 where the batch column is a valid negative
    batch_ref   : (BS, D)      full raw batch (same block every step)
    out_ref     : (1, 1)       final scalar loss (written at last step)
    ang_acc / npair_acc : (1,1) VMEM accumulators across grid steps
    """
    i = pl.program_id(0)

    @pl.when(i == 0)
    def _init():
        ang_acc[...] = jnp.zeros_like(ang_acc)
        npair_acc[...] = jnp.zeros_like(npair_acc)

    eps = 1e-12  # F.normalize eps

    a = a_ref[...].astype(jnp.float32)          # (tn, D)
    p = p_ref[...].astype(jnp.float32)          # (tn, D)
    mask = mask_ref[...].astype(jnp.float32)    # (tn, BS)
    batch = batch_ref[...].astype(jnp.float32)  # (BS, D)

    # --- Normalize the batch ONCE; reuse the row norms for the L2 term. ---
    batch_norm = jnp.sqrt(jnp.sum(batch * batch, axis=-1, keepdims=True))  # (BS,1)
    n_batch = batch / jnp.maximum(batch_norm, eps)

    n_a = a / jnp.maximum(jnp.sqrt(jnp.sum(a * a, axis=-1, keepdims=True)), eps)
    n_p = p / jnp.maximum(jnp.sqrt(jnp.sum(p * p, axis=-1, keepdims=True)), eps)

    # Contract last dims of both operands: (tn, D) x (BS, D) -> (tn, BS).
    dims = (((1,), (1,)), ((), ()))

    # --- Angular term: scores against ALL batch rows via MXU, mask negatives.
    s_ang = lax.dot_general(n_a + n_p, n_batch, dims,
                            precision=lax.Precision.HIGHEST,
                            preferred_element_type=jnp.float32)        # (tn, BS)
    term2 = 2.0 * (1.0 + tan2) * jnp.sum(n_a * n_p, axis=-1, keepdims=True)
    ang_scores = 4.0 * tan2 * s_ang - term2                            # (tn, BS)
    # Masked entries (same-class columns, incl. the pair itself) contribute 0.
    ang_rowsum = jnp.sum(jnp.exp(ang_scores) * mask, axis=1, keepdims=True)
    ang_rows = jnp.log(ang_rowsum + 1.0)                               # (tn, 1)
    ang_acc[...] += jnp.sum(ang_rows, axis=0, keepdims=True)           # (1, 1)

    # --- N-pair term on the RAW embeddings: <a, neg> - <a, p>, masked. ---
    s_raw = lax.dot_general(a, batch, dims,
                            precision=lax.Precision.HIGHEST,
                            preferred_element_type=jnp.float32)        # (tn, BS)
    ap = jnp.sum(a * p, axis=-1, keepdims=True)                        # (tn, 1)
    npair_scores = jnp.clip(s_raw - ap, -50.0, 50.0)
    npair_rowsum = jnp.sum(jnp.exp(npair_scores) * mask, axis=1, keepdims=True)
    npair_rows = jnp.log(npair_rowsum + 1.0)                           # (tn, 1)
    npair_acc[...] += jnp.sum(npair_rows, axis=0, keepdims=True)       # (1, 1)

    @pl.when(i == pl.num_programs(0) - 1)
    def _finalize():
        inv_n = 1.0 / float(n_pairs)
        l2_term = jnp.sum(batch_norm, axis=0, keepdims=True) / batch.shape[0]
        out_ref[...] = (npair_acc[...] * inv_n
                        + lam * (ang_acc[...] * inv_n)
                        + l2_weight * l2_term)


def angular_loss_pallas(anchors, positives, neg_mask, batch, *,
                        alpha_deg=45.0, lam=2.0, l2_weight=0.005,
                        tile_n=None):
    """anchors/positives: (N, D); neg_mask: (N, BS) 1.0 at negative columns;
    batch: (BS, D).  Negatives are never materialized."""
    n_pairs, d = anchors.shape
    bs = batch.shape[0]
    if n_pairs == 0:
        raise ValueError("npair batchminer produced zero pairs")

    # Tile over the pair axis; pad with zero rows + zero masks (padded rows
    # contribute exactly 0 to both accumulated sums).
    if tile_n is None:
        tile_n = n_pairs if n_pairs <= 128 else 128
    padded_n = ((n_pairs + tile_n - 1) // tile_n) * tile_n
    if padded_n != n_pairs:
        pad = padded_n - n_pairs
        anchors = jnp.pad(anchors, ((0, pad), (0, 0)))
        positives = jnp.pad(positives, ((0, pad), (0, 0)))
        neg_mask = jnp.pad(neg_mask, ((0, pad), (0, 0)))

    tan2 = float(np.tan(np.pi / 180.0 * alpha_deg)) ** 2
    kernel = functools.partial(
        _angular_kernel, tan2=tan2, lam=float(lam),
        l2_weight=float(l2_weight), n_pairs=n_pairs)

    out = pl.pallas_call(
        kernel,
        out_shape=jax.ShapeDtypeStruct((1, 1), jnp.float32),
        grid_spec=pltpu.PrefetchScalarGridSpec(
            num_scalar_prefetch=0,
            grid=(padded_n // tile_n,),
            in_specs=[
                pl.BlockSpec((tile_n, d), lambda i: (i, 0)),   # anchors tile
                pl.BlockSpec((tile_n, d), lambda i: (i, 0)),   # positives tile
                pl.BlockSpec((tile_n, bs), lambda i: (i, 0)),  # negative mask tile
                pl.BlockSpec((bs, d), lambda i: (0, 0)),       # full batch (resident)
            ],
            out_specs=pl.BlockSpec((1, 1), lambda i: (0, 0)),
            scratch_shapes=[pltpu.VMEM((1, 1), jnp.float32),   # angular accumulator
                            pltpu.VMEM((1, 1), jnp.float32)],  # npair accumulator
        ),
        compiler_params=pltpu.CompilerParams(
            dimension_semantics=("arbitrary",)),  # reduction over pair tiles
    )(anchors, positives, neg_mask, batch)
    return out[0, 0]


def npair_batchminer(labels):
    """Deterministic npair miner (host glue, not kernel work).

    For each sample i whose class has another member: anchor=i, positive=the
    first other same-class sample, negatives=all samples of other classes."""
    labels = np.asarray(labels)
    bs = labels.shape[0]
    anchors, positives, negatives = [], [], []
    for i in range(bs):
        same = [j for j in range(bs) if labels[j] == labels[i] and j != i]
        if not same:
            continue
        anchors.append(i)
        positives.append(same[0])
        negatives.append([j for j in range(bs) if labels[j] != labels[i]])
    return (np.asarray(anchors, np.int32),
            np.asarray(positives, np.int32),
            np.asarray(negatives, np.int32))


def build_neg_mask(labels, anc_idx):
    """(N, BS) float mask: 1.0 where column j is a different class than anchor i."""
    labels = np.asarray(labels)
    anc_labels = labels[np.asarray(anc_idx)]
    return jnp.asarray(
        (labels[None, :] != anc_labels[:, None]).astype(np.float32))


def reference_loss(a, p, neg, batch, *, alpha_deg, lam, l2_weight):
    """Straightforward JAX port of the PyTorch module (materialized negatives)."""
    tan2 = float(np.tan(np.pi / 180.0 * alpha_deg)) ** 2
    eps = 1e-12
    norm = lambda x: x / jnp.maximum(
        jnp.sqrt(jnp.sum(x * x, axis=-1, keepdims=True)), eps)
    na, npz, nn = norm(a), norm(p), norm(neg)
    t1 = 4.0 * tan2 * jnp.sum((na + npz)[:, None, :] * nn, axis=-1)
    t2 = 2.0 * (1.0 + tan2) * jnp.sum(na * npz, axis=-1, keepdims=True)
    ang = jnp.mean(jnp.log(jnp.sum(jnp.exp(t1 - t2), axis=1) + 1.0))
    isn = jnp.clip(
        jnp.sum(a[:, None, :] * (neg - p[:, None, :]), axis=-1), -50.0, 50.0)
    npl = jnp.mean(jnp.log(jnp.sum(jnp.exp(isn), axis=1) + 1.0))
    l2 = jnp.mean(jnp.sqrt(jnp.sum(batch * batch, axis=1)))
    return npl + lam * ang + l2_weight * l2


if __name__ == "__main__":
    # opt hyperparameters (deterministic, typical defaults for this criterion)
    ALPHA_DEG = 45.0      # opt.loss_angular_alpha
    LAM = 2.0             # opt.loss_angular_npair_ang_weight
    L2W = 0.005           # opt.loss_angular_npair_l2

    BS, D = 8, 32
    key = jax.random.PRNGKey(0)
    batch = jax.random.normal(key, (BS, D), dtype=jnp.float32)
    labels = np.array([0, 0, 1, 1, 2, 2, 3, 3], dtype=np.int32)  # (BS,)

    # batchminer (npair) — index selection done as host glue.
    anc_idx, pos_idx, neg_idx = npair_batchminer(labels)
    anchors = batch[anc_idx]          # (N, D)
    positives = batch[pos_idx]        # (N, D)
    neg_mask = build_neg_mask(labels, anc_idx)   # (N, BS) — kernel never sees (N, M, D)

    loss = angular_loss_pallas(anchors, positives, neg_mask, batch,
                               alpha_deg=ALPHA_DEG, lam=LAM, l2_weight=L2W)
    loss = jax.block_until_ready(loss)

    # Reference check against the original (gathered-negatives) formulation.
    negatives = batch[neg_idx]        # only for the reference, not the kernel
    ref = jax.block_until_ready(
        reference_loss(anchors, positives, negatives, batch,
                       alpha_deg=ALPHA_DEG, lam=LAM, l2_weight=L2W))
    np.testing.assert_allclose(np.asarray(loss), np.asarray(ref),
                               rtol=1e-4, atol=1e-5)
    print("KERNEL_OK")
</pallas_src>

<mosaic_0001>
module attributes {stable_mosaic.version = 11 : i64} {
  func.func @_angular_kernel(%arg0: i32, %arg1: memref<8x32xf32, #tpu.memory_space<vmem>>, %arg2: memref<8x32xf32, #tpu.memory_space<vmem>>, %arg3: memref<8x8xf32, #tpu.memory_space<vmem>>, %arg4: memref<8x32xf32, #tpu.memory_space<vmem>>, %arg5: memref<1x1xf32, #tpu.memory_space<vmem>>, %arg6: memref<1x1xf32, #tpu.memory_space<vmem>>, %arg7: memref<1x1xf32, #tpu.memory_space<vmem>>) attributes {dimension_semantics = [#tpu.dimension_semantics<arbitrary>], iteration_bounds = array<i64: 1>, scalar_prefetch = 0 : i64, scratch_operands = 2 : i64, tpu.core_type = #tpu.core_type<tc>, window_params = [{transform_indices = @transform_0, window_bounds = array<i64: 8, 32>}, {transform_indices = @transform_1, window_bounds = array<i64: 8, 32>}, {transform_indices = @transform_2, window_bounds = array<i64: 8, 8>}, {pipeline_mode = #tpu.pipeline_mode<synchronous>, transform_indices = @transform_3, window_bounds = array<i64: 8, 32>}, {pipeline_mode = #tpu.pipeline_mode<synchronous>, transform_indices = @transform_4, window_bounds = array<i64: 1, 1>}]} {
    %c0_i32 = arith.constant 0 : i32
    %0 = arith.cmpi eq, %arg0, %c0_i32 : i32
    %1 = arith.extui %0 : i1 to i32
    %c0_i32_0 = arith.constant 0 : i32
    %2 = arith.cmpi ne, %1, %c0_i32_0 : i32
    scf.if %2 {
      %cst_37 = arith.constant 0.000000e+00 : f32
      %79 = vector.broadcast %cst_37 : f32 to vector<1x1xf32>
      %c0_38 = arith.constant 0 : index
      %c0_39 = arith.constant 0 : index
      %80 = vector.load %arg6[%c0_38, %c0_39] : memref<1x1xf32, #tpu.memory_space<vmem>>, vector<1x1xf32>
      tpu.vector_store %arg6[%c0_38, %c0_39], %79 {strides = array<i32>} : memref<1x1xf32, #tpu.memory_space<vmem>>, vector<1x1xf32>,
      %cst_40 = arith.constant 0.000000e+00 : f32
      %81 = vector.broadcast %cst_40 : f32 to vector<1x1xf32>
      %c0_41 = arith.constant 0 : index
      %c0_42 = arith.constant 0 : index
      %82 = vector.load %arg7[%c0_41, %c0_42] : memref<1x1xf32, #tpu.memory_space<vmem>>, vector<1x1xf32>
      tpu.vector_store %arg7[%c0_41, %c0_42], %81 {strides = array<i32>} : memref<1x1xf32, #tpu.memory_space<vmem>>, vector<1x1xf32>,
    } else {
    }
    %c0 = arith.constant 0 : index
    %c0_1 = arith.constant 0 : index
    %3 = vector.load %arg1[%c0, %c0_1] : memref<8x32xf32, #tpu.memory_space<vmem>>, vector<8x32xf32>
    %c0_2 = arith.constant 0 : index
    %c0_3 = arith.constant 0 : index
    %4 = vector.load %arg2[%c0_2, %c0_3] : memref<8x32xf32, #tpu.memory_space<vmem>>, vector<8x32xf32>
    %c0_4 = arith.constant 0 : index
    %c0_5 = arith.constant 0 : index
    %5 = vector.load %arg3[%c0_4, %c0_5] : memref<8x8xf32, #tpu.memory_space<vmem>>, vector<8x8xf32>
    %c0_6 = arith.constant 0 : index
    %c0_7 = arith.constant 0 : index
    %6 = vector.load %arg4[%c0_6, %c0_7] : memref<8x32xf32, #tpu.memory_space<vmem>>, vector<8x32xf32>
    %7 = arith.mulf %6, %6 : vector<8x32xf32>
    %cst = arith.constant dense<0.000000e+00> : vector<8xf32>
    %8 = vector.multi_reduction <add>, %7, %cst [1] : vector<8x32xf32> to vector<8xf32>
    %9 = vector.shape_cast %8 : vector<8xf32> to vector<8x1xf32>
    %10 = math.sqrt %9 : vector<8x1xf32>
    %cst_8 = arith.constant 9.99999996E-13 : f32
    %11 = vector.broadcast %cst_8 : f32 to vector<8x1xf32>
    %12 = arith.maximumf %10, %11 : vector<8x1xf32>
    %13 = vector.broadcast %12 : vector<8x1xf32> to vector<8x32xf32>
    %14 = arith.divf %6, %13 : vector<8x32xf32>
    %15 = arith.mulf %3, %3 : vector<8x32xf32>
    %cst_9 = arith.constant dense<0.000000e+00> : vector<8xf32>
    %16 = vector.multi_reduction <add>, %15, %cst_9 [1] : vector<8x32xf32> to vector<8xf32>
    %17 = vector.shape_cast %16 : vector<8xf32> to vector<8x1xf32>
    %18 = math.sqrt %17 : vector<8x1xf32>
    %cst_10 = arith.constant 9.99999996E-13 : f32
    %19 = vector.broadcast %cst_10 : f32 to vector<8x1xf32>
    %20 = arith.maximumf %18, %19 : vector<8x1xf32>
    %21 = vector.broadcast %20 : vector<8x1xf32> to vector<8x32xf32>
    %22 = arith.divf %3, %21 : vector<8x32xf32>
    %23 = arith.mulf %4, %4 : vector<8x32xf32>
    %cst_11 = arith.constant dense<0.000000e+00> : vector<8xf32>
    %24 = vector.multi_reduction <add>, %23, %cst_11 [1] : vector<8x32xf32> to vector<8xf32>
    %25 = vector.shape_cast %24 : vector<8xf32> to vector<8x1xf32>
    %26 = math.sqrt %25 : vector<8x1xf32>
    %cst_12 = arith.constant 9.99999996E-13 : f32
    %27 = vector.broadcast %cst_12 : f32 to vector<8x1xf32>
    %28 = arith.maximumf %26, %27 : vector<8x1xf32>
    %29 = vector.broadcast %28 : vector<8x1xf32> to vector<8x32xf32>
    %30 = arith.divf %4, %29 : vector<8x32xf32>
    %31 = arith.addf %22, %30 : vector<8x32xf32>
    %cst_13 = arith.constant dense<0.000000e+00> : vector<8x8xf32>
    %32 = tpu.matmul %31, %14, %cst_13 {dimension_numbers = #tpu.dot_dimension_numbers<[1], [1], [0], [0], [0, 0, 1, 0], [], []>, precision = #tpu.contract_precision<fp32>} : vector<8x32xf32>, vector<8x32xf32>, vector<8x8xf32> -> vector<8x8xf32>
    %33 = arith.mulf %22, %30 : vector<8x32xf32>
    %cst_14 = arith.constant dense<0.000000e+00> : vector<8xf32>
    %34 = vector.multi_reduction <add>, %33, %cst_14 [1] : vector<8x32xf32> to vector<8xf32>
    %35 = vector.shape_cast %34 : vector<8xf32> to vector<8x1xf32>
    %cst_15 = arith.constant 4.000000e+00 : f32
    %36 = vector.broadcast %cst_15 : f32 to vector<8x1xf32>
    %37 = arith.mulf %36, %35 : vector<8x1xf32>
    %cst_16 = arith.constant 4.000000e+00 : f32
    %38 = vector.broadcast %cst_16 : f32 to vector<8x8xf32>
    %39 = arith.mulf %38, %32 : vector<8x8xf32>
    %40 = vector.broadcast %37 : vector<8x1xf32> to vector<8x8xf32>
    %41 = arith.subf %39, %40 : vector<8x8xf32>
    %42 = math.exp %41 : vector<8x8xf32>
    %43 = arith.mulf %42, %5 : vector<8x8xf32>
    %cst_17 = arith.constant dense<0.000000e+00> : vector<8xf32>
    %44 = vector.multi_reduction <add>, %43, %cst_17 [1] : vector<8x8xf32> to vector<8xf32>
    %45 = vector.shape_cast %44 : vector<8xf32> to vector<8x1xf32>
    %cst_18 = arith.constant 1.000000e+00 : f32
    %46 = vector.broadcast %cst_18 : f32 to vector<8x1xf32>
    %47 = arith.addf %45, %46 : vector<8x1xf32>
    %48 = math.log %47 : vector<8x1xf32>
    %c0_19 = arith.constant 0 : index
    %c0_20 = arith.constant 0 : index
    %49 = vector.load %arg6[%c0_19, %c0_20] : memref<1x1xf32, #tpu.memory_space<vmem>>, vector<1x1xf32>
    %cst_21 = arith.constant dense<0.000000e+00> : vector<1xf32>
    %50 = vector.multi_reduction <add>, %48, %cst_21 [0] : vector<8x1xf32> to vector<1xf32>
    %51 = vector.shape_cast %50 : vector<1xf32> to vector<1x1xf32>
    %52 = arith.addf %49, %51 : vector<1x1xf32>
    %c0_22 = arith.constant 0 : index
    %c0_23 = arith.constant 0 : index
    %53 = vector.load %arg6[%c0_22, %c0_23] : memref<1x1xf32, #tpu.memory_space<vmem>>, vector<1x1xf32>
    tpu.vector_store %arg6[%c0_22, %c0_23], %52 {strides = array<i32>} : memref<1x1xf32, #tpu.memory_space<vmem>>, vector<1x1xf32>,
    %cst_24 = arith.constant dense<0.000000e+00> : vector<8x8xf32>
    %54 = tpu.matmul %3, %6, %cst_24 {dimension_numbers = #tpu.dot_dimension_numbers<[1], [1], [0], [0], [0, 0, 1, 0], [], []>, precision = #tpu.contract_precision<fp32>} : vector<8x32xf32>, vector<8x32xf32>, vector<8x8xf32> -> vector<8x8xf32>
    %55 = arith.mulf %3, %4 : vector<8x32xf32>
    %cst_25 = arith.constant dense<0.000000e+00> : vector<8xf32>
    %56 = vector.multi_reduction <add>, %55, %cst_25 [1] : vector<8x32xf32> to vector<8xf32>
    %57 = vector.shape_cast %56 : vector<8xf32> to vector<8x1xf32>
    %58 = vector.broadcast %57 : vector<8x1xf32> to vector<8x8xf32>
    %59 = arith.subf %54, %58 : vector<8x8xf32>
    %cst_26 = arith.constant -5.000000e+01 : f32
    %cst_27 = arith.constant 5.000000e+01 : f32
    %60 = vector.broadcast %cst_26 : f32 to vector<8x8xf32>
    %61 = arith.maximumf %60, %59 : vector<8x8xf32>
    %62 = vector.broadcast %cst_27 : f32 to vector<8x8xf32>
    %63 = arith.minimumf %62, %61 : vector<8x8xf32>
    %64 = math.exp %63 : vector<8x8xf32>
    %65 = arith.mulf %64, %5 : vector<8x8xf32>
    %cst_28 = arith.constant dense<0.000000e+00> : vector<8xf32>
    %66 = vector.multi_reduction <add>, %65, %cst_28 [1] : vector<8x8xf32> to vector<8xf32>
    %67 = vector.shape_cast %66 : vector<8xf32> to vector<8x1xf32>
    %cst_29 = arith.constant 1.000000e+00 : f32
    %68 = vector.broadcast %cst_29 : f32 to vector<8x1xf32>
    %69 = arith.addf %67, %68 : vector<8x1xf32>
    %70 = math.log %69 : vector<8x1xf32>
    %c0_30 = arith.constant 0 : index
    %c0_31 = arith.constant 0 : index
    %71 = vector.load %arg7[%c0_30, %c0_31] : memref<1x1xf32, #tpu.memory_space<vmem>>, vector<1x1xf32>
    %cst_32 = arith.constant dense<0.000000e+00> : vector<1xf32>
    %72 = vector.multi_reduction <add>, %70, %cst_32 [0] : vector<8x1xf32> to vector<1xf32>
    %73 = vector.shape_cast %72 : vector<1xf32> to vector<1x1xf32>
    %74 = arith.addf %71, %73 : vector<1x1xf32>
    %c0_33 = arith.constant 0 : index
    %c0_34 = arith.constant 0 : index
    %75 = vector.load %arg7[%c0_33, %c0_34] : memref<1x1xf32, #tpu.memory_space<vmem>>, vector<1x1xf32>
    tpu.vector_store %arg7[%c0_33, %c0_34], %74 {strides = array<i32>} : memref<1x1xf32, #tpu.memory_space<vmem>>, vector<1x1xf32>,
    %c0_i32_35 = arith.constant 0 : i32
    %76 = arith.cmpi eq, %arg0, %c0_i32_35 : i32
    %77 = arith.extui %76 : i1 to i32
    %c0_i32_36 = arith.constant 0 : i32
    %78 = arith.cmpi ne, %77, %c0_i32_36 : i32
    scf.if %78 {
      %cst_37 = arith.constant dense<0.000000e+00> : vector<1xf32>
      %79 = vector.multi_reduction <add>, %10, %cst_37 [0] : vector<8x1xf32> to vector<1xf32>
      %80 = vector.shape_cast %79 : vector<1xf32> to vector<1x1xf32>
      %cst_38 = arith.constant 8.000000e+00 : f32
      %81 = vector.broadcast %cst_38 : f32 to vector<1x1xf32>
      %82 = arith.divf %80, %81 : vector<1x1xf32>
      %c0_39 = arith.constant 0 : index
      %c0_40 = arith.constant 0 : index
      %83 = vector.load %arg7[%c0_39, %c0_40] : memref<1x1xf32, #tpu.memory_space<vmem>>, vector<1x1xf32>
      %cst_41 = arith.constant 1.250000e-01 : f32
      %84 = vector.broadcast %cst_41 : f32 to vector<1x1xf32>
      %85 = arith.mulf %83, %84 : vector<1x1xf32>
      %c0_42 = arith.constant 0 : index
      %c0_43 = arith.constant 0 : index
      %86 = vector.load %arg6[%c0_42, %c0_43] : memref<1x1xf32, #tpu.memory_space<vmem>>, vector<1x1xf32>
      %cst_44 = arith.constant 1.250000e-01 : f32
      %87 = vector.broadcast %cst_44 : f32 to vector<1x1xf32>
      %88 = arith.mulf %86, %87 : vector<1x1xf32>
      %cst_45 = arith.constant 2.000000e+00 : f32
      %89 = vector.broadcast %cst_45 : f32 to vector<1x1xf32>
      %90 = arith.mulf %89, %88 : vector<1x1xf32>
      %91 = arith.addf %85, %90 : vector<1x1xf32>
      %cst_46 = arith.constant 5.000000e-03 : f32
      %92 = vector.broadcast %cst_46 : f32 to vector<1x1xf32>
      %93 = arith.mulf %92, %82 : vector<1x1xf32>
      %94 = arith.addf %91, %93 : vector<1x1xf32>
      %c0_47 = arith.constant 0 : index
      %c0_48 = arith.constant 0 : index
      %95 = vector.load %arg5[%c0_47, %c0_48] : memref<1x1xf32, #tpu.memory_space<vmem>>, vector<1x1xf32>
      tpu.vector_store %arg5[%c0_47, %c0_48], %94 {strides = array<i32>} : memref<1x1xf32, #tpu.memory_space<vmem>>, vector<1x1xf32>,
    } else {
    }
    return
  }
  func.func @transform_0(%arg0: i32) -> (i32, i32) {
    %c0_i32 = arith.constant 0 : i32
    %c0_i32_0 = arith.constant 0 : i32
    return %arg0, %c0_i32 : i32, i32
  }
  func.func @transform_1(%arg0: i32) -> (i32, i32) {
    %c0_i32 = arith.constant 0 : i32
    %c0_i32_0 = arith.constant 0 : i32
    return %arg0, %c0_i32 : i32, i32
  }
  func.func @transform_2(%arg0: i32) -> (i32, i32) {
    %c0_i32 = arith.constant 0 : i32
    %c0_i32_0 = arith.constant 0 : i32
    return %arg0, %c0_i32 : i32, i32
  }
  func.func @transform_3(%arg0: i32) -> (i32, i32) {
    %c0_i32 = arith.constant 0 : i32
    %c0_i32_0 = arith.constant 0 : i32
    %c0_i32_1 = arith.constant 0 : i32
    return %c0_i32, %c0_i32_0 : i32, i32
  }
  func.func @transform_4(%arg0: i32) -> (i32, i32) {
    %c0_i32 = arith.constant 0 : i32
    %c0_i32_0 = arith.constant 0 : i32
    %c0_i32_1 = arith.constant 0 : i32
    return %c0_i32, %c0_i32_0 : i32, i32
  }
}

</mosaic_0001>

<llo_original>
// kernel: tpu_custom_call.1
$region0: #{tpu_custom_call.1}
  #allocation0 [shape = 'u32[]', space=smem, size = 0x4, offset = 0x4, fixed_abs, tag = 'smem constant byte address 0x4 - core index']
  #allocation1 [shape = 'u32[144,128]{1,0:T(1,128)}', space=vmem, size = 0x12000, scoped, tag = 'internal scratch']
  #allocation2 [shape = 'f32[1,1]{1,0:T(1,128)}', space=vmem, size = 0x200, scoped, tag = 'scratch operand']
  #allocation3 [shape = 'f32[1,1]{1,0:T(1,128)}', space=vmem, size = 0x200, scoped, tag = 'scratch operand']
  %s0 = inlined_call_operand.hbm [shape: f32[8,32], index: 0, kind: input, shape index: {}]
  %s1 = inlined_call_operand.hbm [shape: f32[8,32], index: 1, kind: input, shape index: {}]
  %s2 = inlined_call_operand.hbm [shape: f32[8,8], index: 2, kind: input, shape index: {}]
  %s3 = inlined_call_operand.vmem [shape: f32[8,32], index: 3, kind: input, shape index: {}]
  %s4 = inlined_call_operand.hbm [shape: f32[1,1], index: 4, kind: output, shape index: {}]
  %s5 = sld [smem:[#allocation0]]
  $region46: #{tpu_custom_call.1} parent=0
    _
  %s7 = ssub.s32 1, %s5
  %s8 = scalar_select 0, %s7, %s5
  $region1: #{tpu_custom_call.1} parent=0
    #allocation4 [shape = 'u8[4096]{0}', space=vmem, size = 0x1000, scoped, tag = 'input window, operand 0, single buffered']
    #allocation5 [shape = 's32[1]{0}', space=sflag, size = 0x4, scoped, tag = 'scoped memory for tpu_custom_call.1']
    #allocation6 [shape = 's32[1]{0}', space=sflag, size = 0x4, scoped, tag = 'scoped memory for tpu_custom_call.1']
    #allocation7 [shape = 'u8[4096]{0}', space=vmem, size = 0x1000, scoped, tag = 'input window, operand 1, single buffered']
    #allocation8 [shape = 's32[1]{0}', space=sflag, size = 0x4, scoped, tag = 'scoped memory for tpu_custom_call.1']
    #allocation9 [shape = 'u8[4096]{0}', space=vmem, size = 0x1000, scoped, tag = 'input window, operand 2, single buffered']
    #allocation10 [shape = 'u8[512]{0}', space=vmem, size = 0x400, scoped, tag = 'output window, operand 0, single buffered']
    %9 = vsyncpa [#allocation5], 0
    %10 = vsyncpa [#allocation8], 0
    %11 = vsyncpa [#allocation6], 0
    // Predicated region
    $region2: #{tpu_custom_call.1} parent=1 // pred_check
      _
    $region3: #{tpu_custom_call.1} parent=1 // pred_check_branch
      %13 = sbr.rel (0) target = $region5
    $region4: #{tpu_custom_call.1} parent=1 // pred_region
      %s15 = ssub.s32 128, 128
      %16 = vsyncadd [#allocation5], %s15
      %s18 = sshll.u32 [#allocation4], 4
      %s19 = int_to_ptr.vmem [resolvable:$true] %s18
      %21 = dma.hbm_to_vmem [thread:$0]  %s0, 128, %s19, [#allocation5]
    $region5: #{tpu_custom_call.1} parent=1 // pred_fallthru
      _
    // Predicated region
    $region6: #{tpu_custom_call.1} parent=1 // pred_check
      _
    $region7: #{tpu_custom_call.1} parent=1 // pred_check_branch
      %23 = sbr.rel (0) target = $region9
    $region8: #{tpu_custom_call.1} parent=1 // pred_region
      %s25 = ssub.s32 128, 128
      %26 = vsyncadd [#allocation8], %s25
      %s28 = sshll.u32 [#allocation7], 4
      %s29 = int_to_ptr.vmem [resolvable:$true] %s28
      %31 = dma.hbm_to_vmem [thread:$0]  %s1, 128, %s29, [#allocation8]
    $region9: #{tpu_custom_call.1} parent=1 // pred_fallthru
      _
    // Predicated region
    $region10: #{tpu_custom_call.1} parent=1 // pred_check
      _
    $region11: #{tpu_custom_call.1} parent=1 // pred_check_branch
      %33 = sbr.rel (0) target = $region13
    $region12: #{tpu_custom_call.1} parent=1 // pred_region
      %s35 = ssub.s32 128, 128
      %36 = vsyncadd [#allocation8], %s35
      %s38 = sshll.u32 [#allocation9], 4
      %s39 = int_to_ptr.vmem [resolvable:$true] %s38
      %41 = dma.hbm_to_vmem [thread:$0]  %s2, 128, %s39, [#allocation8]
    $region13: #{tpu_custom_call.1} parent=1 // pred_fallthru
      _
    // Predicated region
    $region14: #{tpu_custom_call.1} parent=1 // pred_check
      _
    $region15: #{tpu_custom_call.1} parent=1 // pred_check_branch
      %43 = sbr.rel (0) target = $region17
    $region16: #{tpu_custom_call.1} parent=1 // pred_region
      _
    $region17: #{tpu_custom_call.1} parent=1 // pred_fallthru
      _
    // Predicated region
    $region18: #{tpu_custom_call.1} parent=1 // pred_check
      _
    $region19: #{tpu_custom_call.1} parent=1 // pred_check_branch
      %45 = sbr.rel (0) target = $region21
    $region20: #{tpu_custom_call.1} parent=1 // pred_region
      %46 = dma.done [#allocation5], 128
    $region21: #{tpu_custom_call.1} parent=1 // pred_fallthru
      _
    // Predicated region
    $region22: #{tpu_custom_call.1} parent=1 // pred_check
      _
    $region23: #{tpu_custom_call.1} parent=1 // pred_check_branch
      %48 = sbr.rel (0) target = $region25
    $region24: #{tpu_custom_call.1} parent=1 // pred_region
      %49 = dma.done [#allocation8], 128
    $region25: #{tpu_custom_call.1} parent=1 // pred_fallthru
      _
    // Predicated region
    $region26: #{tpu_custom_call.1} parent=1 // pred_check
      _
    $region27: #{tpu_custom_call.1} parent=1 // pred_check_branch
      %51 = sbr.rel (0) target = $region29
    $region28: #{tpu_custom_call.1} parent=1 // pred_region
      %52 = dma.done [#allocation8], 128
    $region29: #{tpu_custom_call.1} parent=1 // pred_fallthru
      _
    %p53 = scmp.eq.s32.totalorder 0, 0
    // Predicated region
    $region30: #{tpu_custom_call.1} parent=1 // pred_check
      %p54 = pneg %p53
    $region31: #{tpu_custom_call.1} parent=1 // pred_check_branch
      %56 = sbr.rel (%p54) target = $region33
    $region32: #{tpu_custom_call.1} parent=1 // pred_region
      %vm57 = vcmask 0
      %58 = vst.msk [vmem:[#allocation2] sm:$0x1] %vm57, 0.0
      %59 = vst.msk [vmem:[#allocation3] sm:$0x1] %vm57, 0.0
    $region33: #{tpu_custom_call.1} parent=1 // pred_fallthru
      _
    %v60 = vld [vmem:[#allocation4] sm:$0xff]
    %v61 = vld [vmem:[#allocation7] sm:$0xff]
    %v62 = vld [vmem:[#allocation9] sm:$0xff]
    %v63 = vld [vmem:[%s3] sm:$0xff]
    %v64 = vmul.f32 %v63, %v63
    %vm65 = vcmask 261120
    %v66 = vsel %vm65, %v64, 0.0
    %67 = vadd.xlane.f32.xlu0 %v66
    %v68 = vpop.xlane.xlu0 %67
    %v69 = vrsqrt.pop %v68
    %v70 = vmul.f32 %v68, %v69
    %vm71 = vcmp.eq.f32.partialorder %v68, inf
    %v72 = vsel %vm71, %v68, %v70
    %vm73 = vcmp.eq.f32.partialorder %v68, 0.0
    %v74 = vand.u32 %v68, 2147483648
    %v75 = vsel %vm73, %v74, %v72
    %v76 = vmax.f32 %v75, 1e-12
    %v77 = vrcp.pop %v76
    %v78 = vmul.f32 %v63, %v77
    %v79 = vmul.f32 %v60, %v60
    %v80 = vsel %vm65, %v79, 0.0
    %81 = vadd.xlane.f32.xlu0 %v80
    %v82 = vpop.xlane.xlu0 %81
    %v83 = vrsqrt.pop %v82
    %v84 = vmul.f32 %v82, %v83
    %vm85 = vcmp.eq.f32.partialorder %v82, inf
    %v86 = vsel %vm85, %v82, %v84
    %vm87 = vcmp.eq.f32.partialorder %v82, 0.0
    %v88 = vand.u32 %v82, 2147483648
    %v89 = vsel %vm87, %v88, %v86
    %v90 = vmax.f32 %v89, 1e-12
    %v91 = vrcp.pop %v90
    %v92 = vmul.f32 %v60, %v91
    %v93 = vmul.f32 %v61, %v61
    %v94 = vsel %vm65, %v93, 0.0
    %95 = vadd.xlane.f32.xlu0 %v94
    %v96 = vpop.xlane.xlu0 %95
    %v97 = vrsqrt.pop %v96
    %v98 = vmul.f32 %v96, %v97
    %vm99 = vcmp.eq.f32.partialorder %v96, inf
    %v100 = vsel %vm99, %v96, %v98
    %vm101 = vcmp.eq.f32.partialorder %v96, 0.0
    %v102 = vand.u32 %v96, 2147483648
    %v103 = vsel %vm101, %v102, %v100
    %v104 = vmax.f32 %v103, 1e-12
    %v105 = vrcp.pop %v104
    %v106 = vmul.f32 %v61, %v105
    %v107 = vadd.f32 %v92, %v106
    %v109 = vsel %vm65, %v107, 0
    %v112 = vsel %vm65, %v78, 0
    %114 = vmatprep.subr.mxu0 0.0
    %v115 = vand.u32 %v112, 4294901760
    %116 = vmatpush1.xpose.msra.mxu0 %v115
    %117 = vmatprep.subr.mxu0 0.0
    %118 = vmatpush1.xpose.msra.mxu0 0.0
    %119 = vmatprep.subr.mxu0 0.0
    %120 = vmatpush1.xpose.msra.mxu0 0.0
    %121 = vmatprep.subr.mxu0 0.0
    %122 = vmatpush1.xpose.msra.mxu0 0.0
    %123 = vmatprep.subr.mxu0 0.0
    %124 = vmatpush1.xpose.msra.mxu0 0.0
    %125 = vmatprep.subr.mxu0 0.0
    %126 = vmatpush1.xpose.msra.mxu0 0.0
    %127 = vmatprep.subr.mxu0 0.0
    %128 = vmatpush1.xpose.msra.mxu0 0.0
    %129 = vmatprep.subr.mxu0 0.0
    %130 = vmatpush1.xpose.msra.mxu0 0.0
    %131 = vmatprep.subr.mxu0 0.0
    %132 = vmatpush1.xpose.msra.mxu0 0.0
    %133 = vmatprep.subr.mxu0 0.0
    %134 = vmatpush1.xpose.msra.mxu0 0.0
    %135 = vmatprep.subr.mxu0 0.0
    %136 = vmatpush1.xpose.msra.mxu0 0.0
    %137 = vmatprep.subr.mxu0 0.0
    %138 = vmatpush1.xpose.msra.mxu0 0.0
    %139 = vmatprep.subr.mxu0 0.0
    %140 = vmatpush1.xpose.msra.mxu0 0.0
    %141 = vmatprep.subr.mxu0 0.0
    %142 = vmatpush1.xpose.msra.mxu0 0.0
    %143 = vmatprep.subr.mxu0 0.0
    %144 = vmatpush1.xpose.msra.mxu0 0.0
    %145 = vmatprep.subr.mxu0 0.0
    %146 = vmatpush1.xpose.msra.mxu0 0.0
    %147 = vmatprep.subr.mxu0 0.0
    %148 = vmatpush1.xpose.msra.mxu0 0.0
    %149 = vmatprep.subr.mxu0 0.0
    %150 = vmatpush1.xpose.msra.mxu0 0.0
    %151 = vmatprep.subr.mxu0 0.0
    %152 = vmatpush1.xpose.msra.mxu0 0.0
    %153 = vmatprep.subr.mxu0 0.0
    %154 = vmatpush1.xpose.msra.mxu0 0.0
    %155 = vmatprep.subr.mxu0 0.0
    %156 = vmatpush1.xpose.msra.mxu0 0.0
    %157 = vmatprep.subr.mxu0 0.0
    %158 = vmatpush1.xpose.msra.mxu0 0.0
    %159 = vmatprep.subr.mxu0 0.0
    %160 = vmatpush1.xpose.msra.mxu0 0.0
    %161 = vmatprep.subr.mxu0 0.0
    %162 = vmatpush1.xpose.msra.mxu0 0.0
    %163 = vmatprep.subr.mxu0 0.0
    %164 = vmatpush1.xpose.msra.mxu0 0.0
    %165 = vmatprep.subr.mxu0 0.0
    %166 = vmatpush1.xpose.msra.mxu0 0.0
    %167 = vmatprep.subr.mxu0 0.0
    %168 = vmatpush1.xpose.msra.mxu0 0.0
    %169 = vmatprep.subr.mxu0 0.0
    %170 = vmatpush1.xpose.msra.mxu0 0.0
    %171 = vmatprep.subr.mxu0 0.0
    %172 = vmatpush1.xpose.msra.mxu0 0.0
    %173 = vmatprep.subr.mxu0 0.0
    %174 = vmatpush1.xpose.msra.mxu0 0.0
    %175 = vmatprep.subr.mxu0 0.0
    %176 = vmatpush1.xpose.msra.mxu0 0.0
    %177 = vmatprep.subr.mxu0 0.0
    %178 = vmatpush1.xpose.msra.mxu0 0.0
    %179 = vmatprep.mubr.f32.mxu0 0.0
    %v180 = vand.u32 %v109, 4294901760
    %v181 = vsub.f32 %v109, %v180
    %v182 = vand.u32 %v181, 4294901760
    %v183 = vsub.f32 %v181, %v182
    %v184 = vand.u32 %v183, 4294901760
    %185 = vmatmul.mubr.f32.gmra.mrb[0].mxu0 %v184
    %v186 = vpop.f32.mrb[0].mxu0
    %v187 = vadd.f32 0.0, %v186
    %v188 = vpop.f32.mrb[0].mxu0
    %189 = vdwg.mxu0
    %190 = vmatprep.subr.mxu0 0.0
    %v191 = vand.u32 %v112, 4294901760
    %v192 = vsub.f32 %v112, %v191
    %v193 = vand.u32 %v192, 4294901760
    %v194 = vsub.f32 %v192, %v193
    %v195 = vand.u32 %v194, 4294901760
    %196 = vmatpush1.xpose.msra.mxu0 %v195
    %197 = vmatprep.subr.mxu0 0.0
    %198 = vmatpush1.xpose.msra.mxu0 0.0
    %199 = vmatprep.subr.mxu0 0.0
    %200 = vmatpush1.xpose.msra.mxu0 0.0
    %201 = vmatprep.subr.mxu0 0.0
    %202 = vmatpush1.xpose.msra.mxu0 0.0
    %203 = vmatprep.subr.mxu0 0.0
    %204 = vmatpush1.xpose.msra.mxu0 0.0
    %205 = vmatprep.subr.mxu0 0.0
    %206 = vmatpush1.xpose.msra.mxu0 0.0
    %207 = vmatprep.subr.mxu0 0.0
    %208 = vmatpush1.xpose.msra.mxu0 0.0
    %209 = vmatprep.subr.mxu0 0.0
    %210 = vmatpush1.xpose.msra.mxu0 0.0
    %211 = vmatprep.subr.mxu0 0.0
    %212 = vmatpush1.xpose.msra.mxu0 0.0
    %213 = vmatprep.subr.mxu0 0.0
    %214 = vmatpush1.xpose.msra.mxu0 0.0
    %215 = vmatprep.subr.mxu0 0.0
    %216 = vmatpush1.xpose.msra.mxu0 0.0
    %217 = vmatprep.subr.mxu0 0.0
    %218 = vmatpush1.xpose.msra.mxu0 0.0
    %219 = vmatprep.subr.mxu0 0.0
    %220 = vmatpush1.xpose.msra.mxu0 0.0
    %221 = vmatprep.subr.mxu0 0.0
    %222 = vmatpush1.xpose.msra.mxu0 0.0
    %223 = vmatprep.subr.mxu0 0.0
    %224 = vmatpush1.xpose.msra.mxu0 0.0
    %225 = vmatprep.subr.mxu0 0.0
    %226 = vmatpush1.xpose.msra.mxu0 0.0
    %227 = vmatprep.subr.mxu0 0.0
    %228 = vmatpush1.xpose.msra.mxu0 0.0
    %229 = vmatprep.subr.mxu0 0.0
    %230 = vmatpush1.xpose.msra.mxu0 0.0
    %231 = vmatprep.subr.mxu0 0.0
    %232 = vmatpush1.xpose.msra.mxu0 0.0
    %233 = vmatprep.subr.mxu0 0.0
    %234 = vmatpush1.xpose.msra.mxu0 0.0
    %235 = vmatprep.subr.mxu0 0.0
    %236 = vmatpush1.xpose.msra.mxu0 0.0
    %237 = vmatprep.subr.mxu0 0.0
    %238 = vmatpush1.xpose.msra.mxu0 0.0
    %239 = vmatprep.subr.mxu0 0.0
    %240 = vmatpush1.xpose.msra.mxu0 0.0
    %241 = vmatprep.subr.mxu0 0.0
    %242 = vmatpush1.xpose.msra.mxu0 0.0
    %243 = vmatprep.subr.mxu0 0.0
    %244 = vmatpush1.xpose.msra.mxu0 0.0
    %245 = vmatprep.subr.mxu0 0.0
    %246 = vmatpush1.xpose.msra.mxu0 0.0
    %247 = vmatprep.subr.mxu0 0.0
    %248 = vmatpush1.xpose.msra.mxu0 0.0
    %249 = vmatprep.subr.mxu0 0.0
    %250 = vmatpush1.xpose.msra.mxu0 0.0
    %251 = vmatprep.subr.mxu0 0.0
    %252 = vmatpush1.xpose.msra.mxu0 0.0
    %253 = vmatprep.subr.mxu0 0.0
    %254 = vmatpush1.xpose.msra.mxu0 0.0
    %255 = vmatprep.subr.mxu0 0.0
    %256 = vmatpush1.xpose.msra.mxu0 0.0
    %257 = vmatprep.subr.mxu0 0.0
    %258 = vmatpush1.xpose.msra.mxu0 0.0
    %259 = vmatprep.mubr.f32.mxu0 0.0
    %v260 = vand.u32 %v109, 4294901760
    %261 = vmatmul.mubr.f32.gmra.mrb[0].mxu0 %v260
    %v262 = vpop.f32.mrb[0].mxu0
    %v263 = vadd.f32 %v187, %v262
    %v264 = vpop.f32.mrb[0].mxu0
    %265 = vdwg.mxu0
    %266 = vmatprep.subr.mxu0 0.0
    %v267 = vand.u32 %v112, 4294901760
    %v268 = vsub.f32 %v112, %v267
    %269 = vmatpush1.xpose.msra.mxu0 %v268
    %270 = vmatprep.subr.mxu0 0.0
    %271 = vmatpush1.xpose.msra.mxu0 0.0
    %272 = vmatprep.subr.mxu0 0.0
    %273 = vmatpush1.xpose.msra.mxu0 0.0
    %274 = vmatprep.subr.mxu0 0.0
    %275 = vmatpush1.xpose.msra.mxu0 0.0
    %276 = vmatprep.subr.mxu0 0.0
    %277 = vmatpush1.xpose.msra.mxu0 0.0
    %278 = vmatprep.subr.mxu0 0.0
    %279 = vmatpush1.xpose.msra.mxu0 0.0
    %280 = vmatprep.subr.mxu0 0.0
    %281 = vmatpush1.xpose.msra.mxu0 0.0
    %282 = vmatprep.subr.mxu0 0.0
    %283 = vmatpush1.xpose.msra.mxu0 0.0
    %284 = vmatprep.subr.mxu0 0.0
    %285 = vmatpush1.xpose.msra.mxu0 0.0
    %286 = vmatprep.subr.mxu0 0.0
    %287 = vmatpush1.xpose.msra.mxu0 0.0
    %288 = vmatprep.subr.mxu0 0.0
    %289 = vmatpush1.xpose.msra.mxu0 0.0
    %290 = vmatprep.subr.mxu0 0.0
    %291 = vmatpush1.xpose.msra.mxu0 0.0
    %292 = vmatprep.subr.mxu0 0.0
    %293 = vmatpush1.xpose.msra.mxu0 0.0
    %294 = vmatprep.subr.mxu0 0.0
    %295 = vmatpush1.xpose.msra.mxu0 0.0
    %296 = vmatprep.subr.mxu0 0.0
    %297 = vmatpush1.xpose.msra.mxu0 0.0
    %298 = vmatprep.subr.mxu0 0.0
    %299 = vmatpush1.xpose.msra.mxu0 0.0
    %300 = vmatprep.subr.mxu0 0.0
    %301 = vmatpush1.xpose.msra.mxu0 0.0
    %302 = vmatprep.subr.mxu0 0.0
    %303 = vmatpush1.xpose.msra.mxu0 0.0
    %304 = vmatprep.subr.mxu0 0.0
    %305 = vmatpush1.xpose.msra.mxu0 0.0
    %306 = vmatprep.subr.mxu0 0.0
    %307 = vmatpush1.xpose.msra.mxu0 0.0
    %308 = vmatprep.subr.mxu0 0.0
    %309 = vmatpush1.xpose.msra.mxu0 0.0
    %310 = vmatprep.subr.mxu0 0.0
    %311 = vmatpush1.xpose.msra.mxu0 0.0
    %312 = vmatprep.subr.mxu0 0.0
    %313 = vmatpush1.xpose.msra.mxu0 0.0
    %314 = vmatprep.subr.mxu0 0.0
    %315 = vmatpush1.xpose.msra.mxu0 0.0
    %316 = vmatprep.subr.mxu0 0.0
    %317 = vmatpush1.xpose.msra.mxu0 0.0
    %318 = vmatprep.subr.mxu0 0.0
    %319 = vmatpush1.xpose.msra.mxu0 0.0
    %320 = vmatprep.subr.mxu0 0.0
    %321 = vmatpush1.xpose.msra.mxu0 0.0
    %322 = vmatprep.subr.mxu0 0.0
    %323 = vmatpush1.xpose.msra.mxu0 0.0
    %324 = vmatprep.subr.mxu0 0.0
    %325 = vmatpush1.xpose.msra.mxu0 0.0
    %326 = vmatprep.subr.mxu0 0.0
    %327 = vmatpush1.xpose.msra.mxu0 0.0
    %328 = vmatprep.subr.mxu0 0.0
    %329 = vmatpush1.xpose.msra.mxu0 0.0
    %330 = vmatprep.subr.mxu0 0.0
    %331 = vmatpush1.xpose.msra.mxu0 0.0
    %332 = vmatprep.mubr.f32.mxu0 0.0
    %v333 = vand.u32 %v109, 4294901760
    %v334 = vsub.f32 %v109, %v333
    %335 = vmatmul.mubr.f32.gmra.mrb[0].mxu0 %v334
    %v336 = vpop.f32.mrb[0].mxu0
    %v337 = vadd.f32 %v263, %v336
    %v338 = vpop.f32.mrb[0].mxu0
    %339 = vdwg.mxu0
    %340 = vmatprep.subr.mxu0 0.0
    %v341 = vand.u32 %v112, 4294901760
    %342 = vmatpush1.xpose.msra.mxu0 %v341
    %343 = vmatprep.subr.mxu0 0.0
    %344 = vmatpush1.xpose.msra.mxu0 0.0
    %345 = vmatprep.subr.mxu0 0.0
    %346 = vmatpush1.xpose.msra.mxu0 0.0
    %347 = vmatprep.subr.mxu0 0.0
    %348 = vmatpush1.xpose.msra.mxu0 0.0
    %349 = vmatprep.subr.mxu0 0.0
    %350 = vmatpush1.xpose.msra.mxu0 0.0
    %351 = vmatprep.subr.mxu0 0.0
    %352 = vmatpush1.xpose.msra.mxu0 0.0
    %353 = vmatprep.subr.mxu0 0.0
    %354 = vmatpush1.xpose.msra.mxu0 0.0
    %355 = vmatprep.subr.mxu0 0.0
    %356 = vmatpush1.xpose.msra.mxu0 0.0
    %357 = vmatprep.subr.mxu0 0.0
    %358 = vmatpush1.xpose.msra.mxu0 0.0
    %359 = vmatprep.subr.mxu0 0.0
    %360 = vmatpush1.xpose.msra.mxu0 0.0
    %361 = vmatprep.subr.mxu0 0.0
    %362 = vmatpush1.xpose.msra.mxu0 0.0
    %363 = vmatprep.subr.mxu0 0.0
    %364 = vmatpush1.xpose.msra.mxu0 0.0
    %365 = vmatprep.subr.mxu0 0.0
    %366 = vmatpush1.xpose.msra.mxu0 0.0
    %367 = vmatprep.subr.mxu0 0.0
    %368 = vmatpush1.xpose.msra.mxu0 0.0
    %369 = vmatprep.subr.mxu0 0.0
    %370 = vmatpush1.xpose.msra.mxu0 0.0
    %371 = vmatprep.subr.mxu0 0.0
    %372 = vmatpush1.xpose.msra.mxu0 0.0
    %373 = vmatprep.subr.mxu0 0.0
    %374 = vmatpush1.xpose.msra.mxu0 0.0
    %375 = vmatprep.subr.mxu0 0.0
    %376 = vmatpush1.xpose.msra.mxu0 0.0
    %377 = vmatprep.subr.mxu0 0.0
    %378 = vmatpush1.xpose.msra.mxu0 0.0
    %379 = vmatprep.subr.mxu0 0.0
    %380 = vmatpush1.xpose.msra.mxu0 0.0
    %381 = vmatprep.subr.mxu0 0.0
    %382 = vmatpush1.xpose.msra.mxu0 0.0
    %383 = vmatprep.subr.mxu0 0.0
    %384 = vmatpush1.xpose.msra.mxu0 0.0
    %385 = vmatprep.subr.mxu0 0.0
    %386 = vmatpush1.xpose.msra.mxu0 0.0
    %387 = vmatprep.subr.mxu0 0.0
    %388 = vmatpush1.xpose.msra.mxu0 0.0
    %389 = vmatprep.subr.mxu0 0.0
    %390 = vmatpush1.xpose.msra.mxu0 0.0
    %391 = vmatprep.subr.mxu0 0.0
    %392 = vmatpush1.xpose.msra.mxu0 0.0
    %393 = vmatprep.subr.mxu0 0.0
    %394 = vmatpush1.xpose.msra.mxu0 0.0
    %395 = vmatprep.subr.mxu0 0.0
    %396 = vmatpush1.xpose.msra.mxu0 0.0
    %397 = vmatprep.subr.mxu0 0.0
    %398 = vmatpush1.xpose.msra.mxu0 0.0
    %399 = vmatprep.subr.mxu0 0.0
    %400 = vmatpush1.xpose.msra.mxu0 0.0
    %401 = vmatprep.subr.mxu0 0.0
    %402 = vmatpush1.xpose.msra.mxu0 0.0
    %403 = vmatprep.subr.mxu0 0.0
    %404 = vmatpush1.xpose.msra.mxu0 0.0
    %405 = vmatprep.mubr.f32.mxu0 0.0
    %v406 = vand.u32 %v109, 4294901760
    %v407 = vsub.f32 %v109, %v406
    %v408 = vand.u32 %v407, 4294901760
    %409 = vmatmul.mubr.f32.gmra.mrb[0].mxu0 %v408
    %v410 = vpop.f32.mrb[0].mxu0
    %v411 = vadd.f32 %v337, %v410
    %v412 = vpop.f32.mrb[0].mxu0
    %413 = vdwg.mxu0
    %414 = vmatprep.subr.mxu0 0.0
    %v415 = vand.u32 %v112, 4294901760
    %v416 = vsub.f32 %v112, %v415
    %v417 = vand.u32 %v416, 4294901760
    %418 = vmatpush1.xpose.msra.mxu0 %v417
    %419 = vmatprep.subr.mxu0 0.0
    %420 = vmatpush1.xpose.msra.mxu0 0.0
    %421 = vmatprep.subr.mxu0 0.0
    %422 = vmatpush1.xpose.msra.mxu0 0.0
    %423 = vmatprep.subr.mxu0 0.0
    %424 = vmatpush1.xpose.msra.mxu0 0.0
    %425 = vmatprep.subr.mxu0 0.0
    %426 = vmatpush1.xpose.msra.mxu0 0.0
    %427 = vmatprep.subr.mxu0 0.0
    %428 = vmatpush1.xpose.msra.mxu0 0.0
    %429 = vmatprep.subr.mxu0 0.0
    %430 = vmatpush1.xpose.msra.mxu0 0.0
    %431 = vmatprep.subr.mxu0 0.0
    %432 = vmatpush1.xpose.msra.mxu0 0.0
    %433 = vmatprep.subr.mxu0 0.0
    %434 = vmatpush1.xpose.msra.mxu0 0.0
    %435 = vmatprep.subr.mxu0 0.0
    %436 = vmatpush1.xpose.msra.mxu0 0.0
    %437 = vmatprep.subr.mxu0 0.0
    %438 = vmatpush1.xpose.msra.mxu0 0.0
    %439 = vmatprep.subr.mxu0 0.0
    %440 = vmatpush1.xpose.msra.mxu0 0.0
    %441 = vmatprep.subr.mxu0 0.0
    %442 = vmatpush1.xpose.msra.mxu0 0.0
    %443 = vmatprep.subr.mxu0 0.0
    %444 = vmatpush1.xpose.msra.mxu0 0.0
    %445 = vmatprep.subr.mxu0 0.0
    %446 = vmatpush1.xpose.msra.mxu0 0.0
    %447 = vmatprep.subr.mxu0 0.0
    %448 = vmatpush1.xpose.msra.mxu0 0.0
    %449 = vmatprep.subr.mxu0 0.0
    %450 = vmatpush1.xpose.msra.mxu0 0.0
    %451 = vmatprep.subr.mxu0 0.0
    %452 = vmatpush1.xpose.msra.mxu0 0.0
    %453 = vmatprep.subr.mxu0 0.0
    %454 = vmatpush1.xpose.msra.mxu0 0.0
    %455 = vmatprep.subr.mxu0 0.0
    %456 = vmatpush1.xpose.msra.mxu0 0.0
    %457 = vmatprep.subr.mxu0 0.0
    %458 = vmatpush1.xpose.msra.mxu0 0.0
    %459 = vmatprep.subr.mxu0 0.0
    %460 = vmatpush1.xpose.msra.mxu0 0.0
    %461 = vmatprep.subr.mxu0 0.0
    %462 = vmatpush1.xpose.msra.mxu0 0.0
    %463 = vmatprep.subr.mxu0 0.0
    %464 = vmatpush1.xpose.msra.mxu0 0.0
    %465 = vmatprep.subr.mxu0 0.0
    %466 = vmatpush1.xpose.msra.mxu0 0.0
    %467 = vmatprep.subr.mxu0 0.0
    %468 = vmatpush1.xpose.msra.mxu0 0.0
    %469 = vmatprep.subr.mxu0 0.0
    %470 = vmatpush1.xpose.msra.mxu0 0.0
    %471 = vmatprep.subr.mxu0 0.0
    %472 = vmatpush1.xpose.msra.mxu0 0.0
    %473 = vmatprep.subr.mxu0 0.0
    %474 = vmatpush1.xpose.msra.mxu0 0.0
    %475 = vmatprep.subr.mxu0 0.0
    %476 = vmatpush1.xpose.msra.mxu0 0.0
    %477 = vmatprep.subr.mxu0 0.0
    %478 = vmatpush1.xpose.msra.mxu0 0.0
    %479 = vmatprep.subr.mxu0 0.0
    %480 = vmatpush1.xpose.msra.mxu0 0.0
    %481 = vmatprep.mubr.f32.mxu0 0.0
    %v482 = vand.u32 %v109, 4294901760
    %483 = vmatmul.mubr.f32.gmra.mrb[0].mxu0 %v482
    %v484 = vpop.f32.mrb[0].mxu0
    %v485 = vadd.f32 %v411, %v484
    %v486 = vpop.f32.mrb[0].mxu0
    %487 = vdwg.mxu0
    %488 = vmatprep.subr.mxu0 0.0
    %v489 = vand.u32 %v112, 4294901760
    %490 = vmatpush1.xpose.msra.mxu0 %v489
    %491 = vmatprep.subr.mxu0 0.0
    %492 = vmatpush1.xpose.msra.mxu0 0.0
    %493 = vmatprep.subr.mxu0 0.0
    %494 = vmatpush1.xpose.msra.mxu0 0.0
    %495 = vmatprep.subr.mxu0 0.0
    %496 = vmatpush1.xpose.msra.mxu0 0.0
    %497 = vmatprep.subr.mxu0 0.0
    %498 = vmatpush1.xpose.msra.mxu0 0.0
    %499 = vmatprep.subr.mxu0 0.0
    %500 = vmatpush1.xpose.msra.mxu0 0.0
    %501 = vmatprep.subr.mxu0 0.0
    %502 = vmatpush1.xpose.msra.mxu0 0.0
    %503 = vmatprep.subr.mxu0 0.0
    %504 = vmatpush1.xpose.msra.mxu0 0.0
    %505 = vmatprep.subr.mxu0 0.0
    %506 = vmatpush1.xpose.msra.mxu0 0.0
    %507 = vmatprep.subr.mxu0 0.0
    %508 = vmatpush1.xpose.msra.mxu0 0.0
    %509 = vmatprep.subr.mxu0 0.0
    %510 = vmatpush1.xpose.msra.mxu0 0.0
    %511 = vmatprep.subr.mxu0 0.0
    %512 = vmatpush1.xpose.msra.mxu0 0.0
    %513 = vmatprep.subr.mxu0 0.0
    %514 = vmatpush1.xpose.msra.mxu0 0.0
    %515 = vmatprep.subr.mxu0 0.0
    %516 = vmatpush1.xpose.msra.mxu0 0.0
    %517 = vmatprep.subr.mxu0 0.0
    %518 = vmatpush1.xpose.msra.mxu0 0.0
    %519 = vmatprep.subr.mxu0 0.0
    %520 = vmatpush1.xpose.msra.mxu0 0.0
    %521 = vmatprep.subr.mxu0 0.0
    %522 = vmatpush1.xpose.msra.mxu0 0.0
    %523 = vmatprep.subr.mxu0 0.0
    %524 = vmatpush1.xpose.msra.mxu0 0.0
    %525 = vmatprep.subr.mxu0 0.0
    %526 = vmatpush1.xpose.msra.mxu0 0.0
    %527 = vmatprep.subr.mxu0 0.0
    %528 = vmatpush1.xpose.msra.mxu0 0.0
    %529 = vmatprep.subr.mxu0 0.0
    %530 = vmatpush1.xpose.msra.mxu0 0.0
    %531 = vmatprep.subr.mxu0 0.0
    %532 = vmatpush1.xpose.msra.mxu0 0.0
    %533 = vmatprep.subr.mxu0 0.0
    %534 = vmatpush1.xpose.msra.mxu0 0.0
    %535 = vmatprep.subr.mxu0 0.0
    %536 = vmatpush1.xpose.msra.mxu0 0.0
    %537 = vmatprep.subr.mxu0 0.0
    %538 = vmatpush1.xpose.msra.mxu0 0.0
    %539 = vmatprep.subr.mxu0 0.0
    %540 = vmatpush1.xpose.msra.mxu0 0.0
    %541 = vmatprep.subr.mxu0 0.0
    %542 = vmatpush1.xpose.msra.mxu0 0.0
    %543 = vmatprep.subr.mxu0 0.0
    %544 = vmatpush1.xpose.msra.mxu0 0.0
    %545 = vmatprep.subr.mxu0 0.0
    %546 = vmatpush1.xpose.msra.mxu0 0.0
    %547 = vmatprep.subr.mxu0 0.0
    %548 = vmatpush1.xpose.msra.mxu0 0.0
    %549 = vmatprep.subr.mxu0 0.0
    %550 = vmatpush1.xpose.msra.mxu0 0.0
    %551 = vmatprep.subr.mxu0 0.0
    %552 = vmatpush1.xpose.msra.mxu0 0.0
    %553 = vmatprep.mubr.f32.mxu0 0.0
    %v554 = vand.u32 %v109, 4294901760
    %555 = vmatmul.mubr.f32.gmra.mrb[0].mxu0 %v554
    %v556 = vpop.f32.mrb[0].mxu0
    %v557 = vadd.f32 %v485, %v556
    %v558 = vpop.f32.mrb[0].mxu0
    %559 = vdwg.mxu0
    %v560 = vmul.f32 %v92, %v106
    %v561 = vsel %vm65, %v560, 0.0
    %562 = vadd.xlane.f32.xlu0 %v561
    %v563 = vpop.xlane.xlu0 %562
    %v564 = vmul.f32 %v563, 4.0
    %v565 = vmul.f32 %v557, 4.0
    %v566 = vsub.f32 %v565, %v564
    %v567 = vmul.f32 %v566, 1.442695
    %v568 = vpow.pop %v567
    %v569 = vmul.f32 %v568, %v62
    %vm570 = vcmask 64512
    %v571 = vsel %vm570, %v569, 0.0
    %572 = vadd.xlane.f32.xlu0 %v571
    %v573 = vpop.xlane.xlu0 %572
    %v574 = vadd.f32 %v573, 1.0
    %v575 = vlog2.pop %v574
    %v576 = vmul.f32 %v575, 0.6931472
    %v577 = vld [vmem:[#allocation2] sm:$0x1]
    %v578 = vrot.slane %v576, 4
    %v579 = vadd.f32 %v576, %v578
    %v580 = vrot.slane %v579, 2
    %v581 = vadd.f32 %v579, %v580
    %v582 = vrot.slane %v581, 1
    %v583 = vadd.f32 %v581, %v582
    %v584 = vadd.f32 %v577, %v583
    %vm585 = vcmask 0
    %586 = vst.msk [vmem:[#allocation2] sm:$0x1] %vm585, %v584
    %v588 = vsel %vm65, %v60, 0
    %v591 = vsel %vm65, %v63, 0
    %593 = vmatprep.subr.mxu0 0.0
    %v594 = vand.u32 %v591, 4294901760
    %595 = vmatpush1.xpose.msra.mxu0 %v594
    %596 = vmatprep.subr.mxu0 0.0
    %597 = vmatpush1.xpose.msra.mxu0 0.0
    %598 = vmatprep.subr.mxu0 0.0
    %599 = vmatpush1.xpose.msra.mxu0 0.0
    %600 = vmatprep.subr.mxu0 0.0
    %601 = vmatpush1.xpose.msra.mxu0 0.0
    %602 = vmatprep.subr.mxu0 0.0
    %603 = vmatpush1.xpose.msra.mxu0 0.0
    %604 = vmatprep.subr.mxu0 0.0
    %605 = vmatpush1.xpose.msra.mxu0 0.0
    %606 = vmatprep.subr.mxu0 0.0
    %607 = vmatpush1.xpose.msra.mxu0 0.0
    %608 = vmatprep.subr.mxu0 0.0
    %609 = vmatpush1.xpose.msra.mxu0 0.0
    %610 = vmatprep.subr.mxu0 0.0
    %611 = vmatpush1.xpose.msra.mxu0 0.0
    %612 = vmatprep.subr.mxu0 0.0
    %613 = vmatpush1.xpose.msra.mxu0 0.0
    %614 = vmatprep.subr.mxu0 0.0
    %615 = vmatpush1.xpose.msra.mxu0 0.0
    %616 = vmatprep.subr.mxu0 0.0
    %617 = vmatpush1.xpose.msra.mxu0 0.0
    %618 = vmatprep.subr.mxu0 0.0
    %619 = vmatpush1.xpose.msra.mxu0 0.0
    %620 = vmatprep.subr.mxu0 0.0
    %621 = vmatpush1.xpose.msra.mxu0 0.0
    %622 = vmatprep.subr.mxu0 0.0
    %623 = vmatpush1.xpose.msra.mxu0 0.0
    %624 = vmatprep.subr.mxu0 0.0
    %625 = vmatpush1.xpose.msra.mxu0 0.0
    %626 = vmatprep.subr.mxu0 0.0
    %627 = vmatpush1.xpose.msra.mxu0 0.0
    %628 = vmatprep.subr.mxu0 0.0
    %629 = vmatpush1.xpose.msra.mxu0 0.0
    %630 = vmatprep.subr.mxu0 0.0
    %631 = vmatpush1.xpose.msra.mxu0 0.0
    %632 = vmatprep.subr.mxu0 0.0
    %633 = vmatpush1.xpose.msra.mxu0 0.0
    %634 = vmatprep.subr.mxu0 0.0
    %635 = vmatpush1.xpose.msra.mxu0 0.0
    %636 = vmatprep.subr.mxu0 0.0
    %637 = vmatpush1.xpose.msra.mxu0 0.0
    %638 = vmatprep.subr.mxu0 0.0
    %639 = vmatpush1.xpose.msra.mxu0 0.0
    %640 = vmatprep.subr.mxu0 0.0
    %641 = vmatpush1.xpose.msra.mxu0 0.0
    %642 = vmatprep.subr.mxu0 0.0
    %643 = vmatpush1.xpose.msra.mxu0 0.0
    %644 = vmatprep.subr.mxu0 0.0
    %645 = vmatpush1.xpose.msra.mxu0 0.0
    %646 = vmatprep.subr.mxu0 0.0
    %647 = vmatpush1.xpose.msra.mxu0 0.0
    %648 = vmatprep.subr.mxu0 0.0
    %649 = vmatpush1.xpose.msra.mxu0 0.0
    %650 = vmatprep.subr.mxu0 0.0
    %651 = vmatpush1.xpose.msra.mxu0 0.0
    %652 = vmatprep.subr.mxu0 0.0
    %653 = vmatpush1.xpose.msra.mxu0 0.0
    %654 = vmatprep.subr.mxu0 0.0
    %655 = vmatpush1.xpose.msra.mxu0 0.0
    %656 = vmatprep.subr.mxu0 0.0
    %657 = vmatpush1.xpose.msra.mxu0 0.0
    %658 = vmatprep.mubr.f32.mxu0 0.0
    %v659 = vand.u32 %v588, 4294901760
    %v660 = vsub.f32 %v588, %v659
    %v661 = vand.u32 %v660, 4294901760
    %v662 = vsub.f32 %v660, %v661
    %v663 = vand.u32 %v662, 4294901760
    %664 = vmatmul.mubr.f32.gmra.mrb[0].mxu0 %v663
    %v665 = vpop.f32.mrb[0].mxu0
    %v666 = vadd.f32 0.0, %v665
    %v667 = vpop.f32.mrb[0].mxu0
    %668 = vdwg.mxu0
    %669 = vmatprep.subr.mxu0 0.0
    %v670 = vand.u32 %v591, 4294901760
    %v671 = vsub.f32 %v591, %v670
    %v672 = vand.u32 %v671, 4294901760
    %v673 = vsub.f32 %v671, %v672
    %v674 = vand.u32 %v673, 4294901760
    %675 = vmatpush1.xpose.msra.mxu0 %v674
    %676 = vmatprep.subr.mxu0 0.0
    %677 = vmatpush1.xpose.msra.mxu0 0.0
    %678 = vmatprep.subr.mxu0 0.0
    %679 = vmatpush1.xpose.msra.mxu0 0.0
    %680 = vmatprep.subr.mxu0 0.0
    %681 = vmatpush1.xpose.msra.mxu0 0.0
    %682 = vmatprep.subr.mxu0 0.0
    %683 = vmatpush1.xpose.msra.mxu0 0.0
    %684 = vmatprep.subr.mxu0 0.0
    %685 = vmatpush1.xpose.msra.mxu0 0.0
    %686 = vmatprep.subr.mxu0 0.0
    %687 = vmatpush1.xpose.msra.mxu0 0.0
    %688 = vmatprep.subr.mxu0 0.0
    %689 = vmatpush1.xpose.msra.mxu0 0.0
    %690 = vmatprep.subr.mxu0 0.0
    %691 = vmatpush1.xpose.msra.mxu0 0.0
    %692 = vmatprep.subr.mxu0 0.0
    %693 = vmatpush1.xpose.msra.mxu0 0.0
    %694 = vmatprep.subr.mxu0 0.0
    %695 = vmatpush1.xpose.msra.mxu0 0.0
    %696 = vmatprep.subr.mxu0 0.0
    %697 = vmatpush1.xpose.msra.mxu0 0.0
    %698 = vmatprep.subr.mxu0 0.0
    %699 = vmatpush1.xpose.msra.mxu0 0.0
    %700 = vmatprep.subr.mxu0 0.0
    %701 = vmatpush1.xpose.msra.mxu0 0.0
    %702 = vmatprep.subr.mxu0 0.0
    %703 = vmatpush1.xpose.msra.mxu0 0.0
    %704 = vmatprep.subr.mxu0 0.0
    %705 = vmatpush1.xpose.msra.mxu0 0.0
    %706 = vmatprep.subr.mxu0 0.0
    %707 = vmatpush1.xpose.msra.mxu0 0.0
    %708 = vmatprep.subr.mxu0 0.0
    %709 = vmatpush1.xpose.msra.mxu0 0.0
    %710 = vmatprep.subr.mxu0 0.0
    %711 = vmatpush1.xpose.msra.mxu0 0.0
    %712 = vmatprep.subr.mxu0 0.0
    %713 = vmatpush1.xpose.msra.mxu0 0.0
    %714 = vmatprep.subr.mxu0 0.0
    %715 = vmatpush1.xpose.msra.mxu0 0.0
    %716 = vmatprep.subr.mxu0 0.0
    %717 = vmatpush1.xpose.msra.mxu0 0.0
    %718 = vmatprep.subr.mxu0 0.0
    %719 = vmatpush1.xpose.msra.mxu0 0.0
    %720 = vmatprep.subr.mxu0 0.0
    %721 = vmatpush1.xpose.msra.mxu0 0.0
    %722 = vmatprep.subr.mxu0 0.0
    %723 = vmatpush1.xpose.msra.mxu0 0.0
    %724 = vmatprep.subr.mxu0 0.0
    %725 = vmatpush1.xpose.msra.mxu0 0.0
    %726 = vmatprep.subr.mxu0 0.0
    %727 = vmatpush1.xpose.msra.mxu0 0.0
    %728 = vmatprep.subr.mxu0 0.0
    %729 = vmatpush1.xpose.msra.mxu0 0.0
    %730 = vmatprep.subr.mxu0 0.0
    %731 = vmatpush1.xpose.msra.mxu0 0.0
    %732 = vmatprep.subr.mxu0 0.0
    %733 = vmatpush1.xpose.msra.mxu0 0.0
    %734 = vmatprep.subr.mxu0 0.0
    %735 = vmatpush1.xpose.msra.mxu0 0.0
    %736 = vmatprep.subr.mxu0 0.0
    %737 = vmatpush1.xpose.msra.mxu0 0.0
    %738 = vmatprep.mubr.f32.mxu0 0.0
    %v739 = vand.u32 %v588, 4294901760
    %740 = vmatmul.mubr.f32.gmra.mrb[0].mxu0 %v739
    %v741 = vpop.f32.mrb[0].mxu0
    %v742 = vadd.f32 %v666, %v741
    %v743 = vpop.f32.mrb[0].mxu0
    %744 = vdwg.mxu0
    %745 = vmatprep.subr.mxu0 0.0
    %v746 = vand.u32 %v591, 4294901760
    %v747 = vsub.f32 %v591, %v746
    %748 = vmatpush1.xpose.msra.mxu0 %v747
    %749 = vmatprep.subr.mxu0 0.0
    %750 = vmatpush1.xpose.msra.mxu0 0.0
    %751 = vmatprep.subr.mxu0 0.0
    %752 = vmatpush1.xpose.msra.mxu0 0.0
    %753 = vmatprep.subr.mxu0 0.0
    %754 = vmatpush1.xpose.msra.mxu0 0.0
    %755 = vmatprep.subr.mxu0 0.0
    %756 = vmatpush1.xpose.msra.mxu0 0.0
    %757 = vmatprep.subr.mxu0 0.0
    %758 = vmatpush1.xpose.msra.mxu0 0.0
    %759 = vmatprep.subr.mxu0 0.0
    %760 = vmatpush1.xpose.msra.mxu0 0.0
    %761 = vmatprep.subr.mxu0 0.0
    %762 = vmatpush1.xpose.msra.mxu0 0.0
    %763 = vmatprep.subr.mxu0 0.0
    %764 = vmatpush1.xpose.msra.mxu0 0.0
    %765 = vmatprep.subr.mxu0 0.0
    %766 = vmatpush1.xpose.msra.mxu0 0.0
    %767 = vmatprep.subr.mxu0 0.0
    %768 = vmatpush1.xpose.msra.mxu0 0.0
    %769 = vmatprep.subr.mxu0 0.0
    %770 = vmatpush1.xpose.msra.mxu0 0.0
    %771 = vmatprep.subr.mxu0 0.0
    %772 = vmatpush1.xpose.msra.mxu0 0.0
    %773 = vmatprep.subr.mxu0 0.0
    %774 = vmatpush1.xpose.msra.mxu0 0.0
    %775 = vmatprep.subr.mxu0 0.0
    %776 = vmatpush1.xpose.msra.mxu0 0.0
    %777 = vmatprep.subr.mxu0 0.0
    %778 = vmatpush1.xpose.msra.mxu0 0.0
    %779 = vmatprep.subr.mxu0 0.0
    %780 = vmatpush1.xpose.msra.mxu0 0.0
    %781 = vmatprep.subr.mxu0 0.0
    %782 = vmatpush1.xpose.msra.mxu0 0.0
    %783 = vmatprep.subr.mxu0 0.0
    %784 = vmatpush1.xpose.msra.mxu0 0.0
    %785 = vmatprep.subr.mxu0 0.0
    %786 = vmatpush1.xpose.msra.mxu0 0.0
    %787 = vmatprep.subr.mxu0 0.0
    %788 = vmatpush1.xpose.msra.mxu0 0.0
    %789 = vmatprep.subr.mxu0 0.0
    %790 = vmatpush1.xpose.msra.mxu0 0.0
    %791 = vmatprep.subr.mxu0 0.0
    %792 = vmatpush1.xpose.msra.mxu0 0.0
    %793 = vmatprep.subr.mxu0 0.0
    %794 = vmatpush1.xpose.msra.mxu0 0.0
    %795 = vmatprep.subr.mxu0 0.0
    %796 = vmatpush1.xpose.msra.mxu0 0.0
    %797 = vmatprep.subr.mxu0 0.0
    %798 = vmatpush1.xpose.msra.mxu0 0.0
    %799 = vmatprep.subr.mxu0 0.0
    %800 = vmatpush1.xpose.msra.mxu0 0.0
    %801 = vmatprep.subr.mxu0 0.0
    %802 = vmatpush1.xpose.msra.mxu0 0.0
    %803 = vmatprep.subr.mxu0 0.0
    %804 = vmatpush1.xpose.msra.mxu0 0.0
    %805 = vmatprep.subr.mxu0 0.0
    %806 = vmatpush1.xpose.msra.mxu0 0.0
    %807 = vmatprep.subr.mxu0 0.0
    %808 = vmatpush1.xpose.msra.mxu0 0.0
    %809 = vmatprep.subr.mxu0 0.0
    %810 = vmatpush1.xpose.msra.mxu0 0.0
    %811 = vmatprep.mubr.f32.mxu0 0.0
    %v812 = vand.u32 %v588, 4294901760
    %v813 = vsub.f32 %v588, %v812
    %814 = vmatmul.mubr.f32.gmra.mrb[0].mxu0 %v813
    %v815 = vpop.f32.mrb[0].mxu0
    %v816 = vadd.f32 %v742, %v815
    %v817 = vpop.f32.mrb[0].mxu0
    %818 = vdwg.mxu0
    %819 = vmatprep.subr.mxu0 0.0
    %v820 = vand.u32 %v591, 4294901760
    %821 = vmatpush1.xpose.msra.mxu0 %v820
    %822 = vmatprep.subr.mxu0 0.0
    %823 = vmatpush1.xpose.msra.mxu0 0.0
    %824 = vmatprep.subr.mxu0 0.0
    %825 = vmatpush1.xpose.msra.mxu0 0.0
    %826 = vmatprep.subr.mxu0 0.0
    %827 = vmatpush1.xpose.msra.mxu0 0.0
    %828 = vmatprep.subr.mxu0 0.0
    %829 = vmatpush1.xpose.msra.mxu0 0.0
    %830 = vmatprep.subr.mxu0 0.0
    %831 = vmatpush1.xpose.msra.mxu0 0.0
    %832 = vmatprep.subr.mxu0 0.0
    %833 = vmatpush1.xpose.msra.mxu0 0.0
    %834 = vmatprep.subr.mxu0 0.0
    %835 = vmatpush1.xpose.msra.mxu0 0.0
    %836 = vmatprep.subr.mxu0 0.0
    %837 = vmatpush1.xpose.msra.mxu0 0.0
    %838 = vmatprep.subr.mxu0 0.0
    %839 = vmatpush1.xpose.msra.mxu0 0.0
    %840 = vmatprep.subr.mxu0 0.0
    %841 = vmatpush1.xpose.msra.mxu0 0.0
    %842 = vmatprep.subr.mxu0 0.0
    %843 = vmatpush1.xpose.msra.mxu0 0.0
    %844 = vmatprep.subr.mxu0 0.0
    %845 = vmatpush1.xpose.msra.mxu0 0.0
    %846 = vmatprep.subr.mxu0 0.0
    %847 = vmatpush1.xpose.msra.mxu0 0.0
    %848 = vmatprep.subr.mxu0 0.0
    %849 = vmatpush1.xpose.msra.mxu0 0.0
    %850 = vmatprep.subr.mxu0 0.0
    %851 = vmatpush1.xpose.msra.mxu0 0.0
    %852 = vmatprep.subr.mxu0 0.0
    %853 = vmatpush1.xpose.msra.mxu0 0.0
    %854 = vmatprep.subr.mxu0 0.0
    %855 = vmatpush1.xpose.msra.mxu0 0.0
    %856 = vmatprep.subr.mxu0 0.0
    %857 = vmatpush1.xpose.msra.mxu0 0.0
    %858 = vmatprep.subr.mxu0 0.0
    %859 = vmatpush1.xpose.msra.mxu0 0.0
    %860 = vmatprep.subr.mxu0 0.0
    %861 = vmatpush1.xpose.msra.mxu0 0.0
    %862 = vmatprep.subr.mxu0 0.0
    %863 = vmatpush1.xpose.msra.mxu0 0.0
    %864 = vmatprep.subr.mxu0 0.0
    %865 = vmatpush1.xpose.msra.mxu0 0.0
    %866 = vmatprep.subr.mxu0 0.0
    %867 = vmatpush1.xpose.msra.mxu0 0.0
    %868 = vmatprep.subr.mxu0 0.0
    %869 = vmatpush1.xpose.msra.mxu0 0.0
    %870 = vmatprep.subr.mxu0 0.0
    %871 = vmatpush1.xpose.msra.mxu0 0.0
    %872 = vmatprep.subr.mxu0 0.0
    %873 = vmatpush1.xpose.msra.mxu0 0.0
    %874 = vmatprep.subr.mxu0 0.0
    %875 = vmatpush1.xpose.msra.mxu0 0.0
    %876 = vmatprep.subr.mxu0 0.0
    %877 = vmatpush1.xpose.msra.mxu0 0.0
    %878 = vmatprep.subr.mxu0 0.0
    %879 = vmatpush1.xpose.msra.mxu0 0.0
    %880 = vmatprep.subr.mxu0 0.0
    %881 = vmatpush1.xpose.msra.mxu0 0.0
    %882 = vmatprep.subr.mxu0 0.0
    %883 = vmatpush1.xpose.msra.mxu0 0.0
    %884 = vmatprep.mubr.f32.mxu0 0.0
    %v885 = vand.u32 %v588, 4294901760
    %v886 = vsub.f32 %v588, %v885
    %v887 = vand.u32 %v886, 4294901760
    %888 = vmatmul.mubr.f32.gmra.mrb[0].mxu0 %v887
    %v889 = vpop.f32.mrb[0].mxu0
    %v890 = vadd.f32 %v816, %v889
    %v891 = vpop.f32.mrb[0].mxu0
    %892 = vdwg.mxu0
    %893 = vmatprep.subr.mxu0 0.0
    %v894 = vand.u32 %v591, 4294901760
    %v895 = vsub.f32 %v591, %v894
    %v896 = vand.u32 %v895, 4294901760
    %897 = vmatpush1.xpose.msra.mxu0 %v896
    %898 = vmatprep.subr.mxu0 0.0
    %899 = vmatpush1.xpose.msra.mxu0 0.0
    %900 = vmatprep.subr.mxu0 0.0
    %901 = vmatpush1.xpose.msra.mxu0 0.0
    %902 = vmatprep.subr.mxu0 0.0
    %903 = vmatpush1.xpose.msra.mxu0 0.0
    %904 = vmatprep.subr.mxu0 0.0
    %905 = vmatpush1.xpose.msra.mxu0 0.0
    %906 = vmatprep.subr.mxu0 0.0
    %907 = vmatpush1.xpose.msra.mxu0 0.0
    %908 = vmatprep.subr.mxu0 0.0
    %909 = vmatpush1.xpose.msra.mxu0 0.0
    %910 = vmatprep.subr.mxu0 0.0
    %911 = vmatpush1.xpose.msra.mxu0 0.0
    %912 = vmatprep.subr.mxu0 0.0
    %913 = vmatpush1.xpose.msra.mxu0 0.0
    %914 = vmatprep.subr.mxu0 0.0
    %915 = vmatpush1.xpose.msra.mxu0 0.0
    %916 = vmatprep.subr.mxu0 0.0
    %917 = vmatpush1.xpose.msra.mxu0 0.0
    %918 = vmatprep.subr.mxu0 0.0
    %919 = vmatpush1.xpose.msra.mxu0 0.0
    %920 = vmatprep.subr.mxu0 0.0
    %921 = vmatpush1.xpose.msra.mxu0 0.0
    %922 = vmatprep.subr.mxu0 0.0
    %923 = vmatpush1.xpose.msra.mxu0 0.0
    %924 = vmatprep.subr.mxu0 0.0
    %925 = vmatpush1.xpose.msra.mxu0 0.0
    %926 = vmatprep.subr.mxu0 0.0
    %927 = vmatpush1.xpose.msra.mxu0 0.0
    %928 = vmatprep.subr.mxu0 0.0
    %929 = vmatpush1.xpose.msra.mxu0 0.0
    %930 = vmatprep.subr.mxu0 0.0
    %931 = vmatpush1.xpose.msra.mxu0 0.0
    %932 = vmatprep.subr.mxu0 0.0
    %933 = vmatpush1.xpose.msra.mxu0 0.0
    %934 = vmatprep.subr.mxu0 0.0
    %935 = vmatpush1.xpose.msra.mxu0 0.0
    %936 = vmatprep.subr.mxu0 0.0
    %937 = vmatpush1.xpose.msra.mxu0 0.0
    %938 = vmatprep.subr.mxu0 0.0
    %939 = vmatpush1.xpose.msra.mxu0 0.0
    %940 = vmatprep.subr.mxu0 0.0
    %941 = vmatpush1.xpose.msra.mxu0 0.0
    %942 = vmatprep.subr.mxu0 0.0
    %943 = vmatpush1.xpose.msra.mxu0 0.0
    %944 = vmatprep.subr.mxu0 0.0
    %945 = vmatpush1.xpose.msra.mxu0 0.0
    %946 = vmatprep.subr.mxu0 0.0
    %947 = vmatpush1.xpose.msra.mxu0 0.0
    %948 = vmatprep.subr.mxu0 0.0
    %949 = vmatpush1.xpose.msra.mxu0 0.0
    %950 = vmatprep.subr.mxu0 0.0
    %951 = vmatpush1.xpose.msra.mxu0 0.0
    %952 = vmatprep.subr.mxu0 0.0
    %953 = vmatpush1.xpose.msra.mxu0 0.0
    %954 = vmatprep.subr.mxu0 0.0
    %955 = vmatpush1.xpose.msra.mxu0 0.0
    %956 = vmatprep.subr.mxu0 0.0
    %957 = vmatpush1.xpose.msra.mxu0 0.0
    %958 = vmatprep.subr.mxu0 0.0
    %959 = vmatpush1.xpose.msra.mxu0 0.0
    %960 = vmatprep.mubr.f32.mxu0 0.0
    %v961 = vand.u32 %v588, 4294901760
    %962 = vmatmul.mubr.f32.gmra.mrb[0].mxu0 %v961
    %v963 = vpop.f32.mrb[0].mxu0
    %v964 = vadd.f32 %v890, %v963
    %v965 = vpop.f32.mrb[0].mxu0
    %966 = vdwg.mxu0
    %967 = vmatprep.subr.mxu0 0.0
    %v968 = vand.u32 %v591, 4294901760
    %969 = vmatpush1.xpose.msra.mxu0 %v968
    %970 = vmatprep.subr.mxu0 0.0
    %971 = vmatpush1.xpose.msra.mxu0 0.0
    %972 = vmatprep.subr.mxu0 0.0
    %973 = vmatpush1.xpose.msra.mxu0 0.0
    %974 = vmatprep.subr.mxu0 0.0
    %975 = vmatpush1.xpose.msra.mxu0 0.0
    %976 = vmatprep.subr.mxu0 0.0
    %977 = vmatpush1.xpose.msra.mxu0 0.0
    %978 = vmatprep.subr.mxu0 0.0
    %979 = vmatpush1.xpose.msra.mxu0 0.0
    %980 = vmatprep.subr.mxu0 0.0
    %981 = vmatpush1.xpose.msra.mxu0 0.0
    %982 = vmatprep.subr.mxu0 0.0
    %983 = vmatpush1.xpose.msra.mxu0 0.0
    %984 = vmatprep.subr.mxu0 0.0
    %985 = vmatpush1.xpose.msra.mxu0 0.0
    %986 = vmatprep.subr.mxu0 0.0
    %987 = vmatpush1.xpose.msra.mxu0 0.0
    %988 = vmatprep.subr.mxu0 0.0
    %989 = vmatpush1.xpose.msra.mxu0 0.0
    %990 = vmatprep.subr.mxu0 0.0
    %991 = vmatpush1.xpose.msra.mxu0 0.0
    %992 = vmatprep.subr.mxu0 0.0
    %993 = vmatpush1.xpose.msra.mxu0 0.0
    %994 = vmatprep.subr.mxu0 0.0
    %995 = vmatpush1.xpose.msra.mxu0 0.0
    %996 = vmatprep.subr.mxu0 0.0
    %997 = vmatpush1.xpose.msra.mxu0 0.0
    %998 = vmatprep.subr.mxu0 0.0
    %999 = vmatpush1.xpose.msra.mxu0 0.0
    %1000 = vmatprep.subr.mxu0 0.0
    %1001 = vmatpush1.xpose.msra.mxu0 0.0
    %1002 = vmatprep.subr.mxu0 0.0
    %1003 = vmatpush1.xpose.msra.mxu0 0.0
    %1004 = vmatprep.subr.mxu0 0.0
    %1005 = vmatpush1.xpose.msra.mxu0 0.0
    %1006 = vmatprep.subr.mxu0 0.0
    %1007 = vmatpush1.xpose.msra.mxu0 0.0
    %1008 = vmatprep.subr.mxu0 0.0
    %1009 = vmatpush1.xpose.msra.mxu0 0.0
    %1010 = vmatprep.subr.mxu0 0.0
    %1011 = vmatpush1.xpose.msra.mxu0 0.0
    %1012 = vmatprep.subr.mxu0 0.0
    %1013 = vmatpush1.xpose.msra.mxu0 0.0
    %1014 = vmatprep.subr.mxu0 0.0
    %1015 = vmatpush1.xpose.msra.mxu0 0.0
    %1016 = vmatprep.subr.mxu0 0.0
    %1017 = vmatpush1.xpose.msra.mxu0 0.0
    %1018 = vmatprep.subr.mxu0 0.0
    %1019 = vmatpush1.xpose.msra.mxu0 0.0
    %1020 = vmatprep.subr.mxu0 0.0
    %1021 = vmatpush1.xpose.msra.mxu0 0.0
    %1022 = vmatprep.subr.mxu0 0.0
    %1023 = vmatpush1.xpose.msra.mxu0 0.0
    %1024 = vmatprep.subr.mxu0 0.0
    %1025 = vmatpush1.xpose.msra.mxu0 0.0
    %1026 = vmatprep.subr.mxu0 0.0
    %1027 = vmatpush1.xpose.msra.mxu0 0.0
    %1028 = vmatprep.subr.mxu0 0.0
    %1029 = vmatpush1.xpose.msra.mxu0 0.0
    %1030 = vmatprep.subr.mxu0 0.0
    %1031 = vmatpush1.xpose.msra.mxu0 0.0
    %1032 = vmatprep.mubr.f32.mxu0 0.0
    %v1033 = vand.u32 %v588, 4294901760
    %1034 = vmatmul.mubr.f32.gmra.mrb[0].mxu0 %v1033
    %v1035 = vpop.f32.mrb[0].mxu0
    %v1036 = vadd.f32 %v964, %v1035
    %v1037 = vpop.f32.mrb[0].mxu0
    %1038 = vdwg.mxu0
    %v1039 = vmul.f32 %v60, %v61
    %v1040 = vsel %vm65, %v1039, 0.0
    %1041 = vadd.xlane.f32.xlu0 %v1040
    %v1042 = vpop.xlane.xlu0 %1041
    %v1043 = vsub.f32 %v1036, %v1042
    %v1044 = vmax.f32 %v1043, -50.0
    %v1045 = vmin.f32 %v1044, 50.0
    %v1046 = vmul.f32 %v1045, 1.442695
    %v1047 = vpow.pop %v1046
    %v1048 = vmul.f32 %v1047, %v62
    %v1049 = vsel %vm570, %v1048, 0.0
    %1050 = vadd.xlane.f32.xlu0 %v1049
    %v1051 = vpop.xlane.xlu0 %1050
    %v1052 = vadd.f32 %v1051, 1.0
    %v1053 = vlog2.pop %v1052
    %v1054 = vmul.f32 %v1053, 0.6931472
    %v1055 = vld [vmem:[#allocation3] sm:$0x1]
    %v1056 = vrot.slane %v1054, 4
    %v1057 = vadd.f32 %v1054, %v1056
    %v1058 = vrot.slane %v1057, 2
    %v1059 = vadd.f32 %v1057, %v1058
    %v1060 = vrot.slane %v1059, 1
    %v1061 = vadd.f32 %v1059, %v1060
    %v1062 = vadd.f32 %v1055, %v1061
    %1063 = vst.msk [vmem:[#allocation3] sm:$0x1] %vm585, %v1062
    // Predicated region
    $region34: #{tpu_custom_call.1} parent=1 // pred_check
      %p1064 = pneg %p53
    $region35: #{tpu_custom_call.1} parent=1 // pred_check_branch
      %1066 = sbr.rel (%p1064) target = $region37
    $region36: #{tpu_custom_call.1} parent=1 // pred_region
      %v1067 = vrot.slane %v75, 4
      %v1068 = vadd.f32 %v75, %v1067
      %v1069 = vrot.slane %v1068, 2
      %v1070 = vadd.f32 %v1068, %v1069
      %v1071 = vrot.slane %v1070, 1
      %v1072 = vadd.f32 %v1070, %v1071
      %v1073 = vrcp.pop 8.0
      %v1074 = vmul.f32 %v1072, %v1073
      %v1075 = vld [vmem:[#allocation3] sm:$0x1]
      %v1076 = vmul.f32 %v1075, 0.125
      %v1077 = vld [vmem:[#allocation2] sm:$0x1]
      %v1078 = vmul.f32 %v1077, 0.125
      %v1079 = vmul.f32 %v1078, 2.0
      %v1080 = vadd.f32 %v1076, %v1079
      %v1081 = vmul.f32 %v1074, 0.005
      %v1082 = vadd.f32 %v1080, %v1081
      %1083 = vst.msk [vmem:[#allocation10] sm:$0x1] %vm585, %v1082
    $region37: #{tpu_custom_call.1} parent=1 // pred_fallthru
      _
    // Predicated region
    $region38: #{tpu_custom_call.1} parent=1 // pred_check
      _
    $region39: #{tpu_custom_call.1} parent=1 // pred_check_branch
      %1085 = sbr.rel (0) target = $region41
    $region40: #{tpu_custom_call.1} parent=1 // pred_region
      %s1087 = ssub.s32 16, 16
      %1088 = vsyncadd [#allocation6], %s1087
      %s1090 = sshll.u32 [#allocation10], 4
      %s1091 = int_to_ptr.vmem [resolvable:$true] %s1090
      %1093 = dma.vmem_to_hbm [thread:$0]  %s1091, 16, %s4, [#allocation6]
    $region41: #{tpu_custom_call.1} parent=1 // pred_fallthru
      _
    // Predicated region
    $region42: #{tpu_custom_call.1} parent=1 // pred_check
      _
    $region43: #{tpu_custom_call.1} parent=1 // pred_check_branch
      %1095 = sbr.rel (0) target = $region45
    $region44: #{tpu_custom_call.1} parent=1 // pred_region
      %1096 = dma.done [#allocation6], 16
    $region45: #{tpu_custom_call.1} parent=1 // pred_fallthru
      _
    %1097 = vsyncpa [#allocation5], 1
    %1098 = vsyncpa [#allocation8], 1
    %1099 = vsyncpa [#allocation6], 1

</llo_original>
